<compile_context>
chip_gen: v7x
topology: tpu7x:2x2x1
jax: 0.10.0
libtpu: 0.0.40
codegen_flags: <defaults>
</compile_context>

<pallas_src>
import jax
import jax.numpy as jnp
import numpy as np
from jax.experimental import pallas as pl
from jax.experimental.pallas import tpu as pltpu

EMBEDDING_DIM = 100   # fixed by the forward's slicing (x[:, :100] / x[:, 100:200])
GP = 128              # one lane tile; width of each fused-output column block


def _round_up(n, m):
    return ((n + m - 1) // m) * m


def lstm_similarity_kernel(x_ref, wg_ref, bg_ref, w1_ref, w2_ref, b2_ref, out_ref):
    x = x_ref[...]                                            # [TB, 2E+F]

    # One fused matmul over the raw input rows (WG layout built in the wrapper).
    z = jnp.dot(x, wg_ref[...], preferred_element_type=jnp.float32) + bg_ref[...]

    io = jax.nn.sigmoid(z[:, 0:GP])          # [i_q|i_p|pad|o_q|o_p], 128-aligned
    g = jnp.tanh(z[:, GP:2 * GP])            # [g_q|g_p|0...]
    feat_lin = z[:, 2 * GP:3 * GP]           # fc1 @ feat + b1 (linear)

    c_t = jnp.tanh(io * g)                   # lanes 0..2H-1: tanh(i*g); rest 0
    o_al = pltpu.roll(io, shift=GP // 2, axis=1)   # o gates -> lanes 0..2H-1 (XLU)
    h = o_al * c_t                           # [h_q | h_p | 0...]

    # fc1(cat[h_q,h_p,feat]) = h @ W1qp + (x @ W1feat + b1)   (last term == feat_lin)
    z1 = jnp.dot(h, w1_ref[...], preferred_element_type=jnp.float32) + feat_lin
    h1 = jnp.maximum(z1, 0.0)                # [TB, 128]; pad lanes stay exactly 0

    # fc2: contract last dims of w2 [1,128] and h1 [TB,128] -> lane-dense [1, TB]
    logits = jax.lax.dot_general(
        w2_ref[...], h1, dimension_numbers=(((1,), (1,)), ((), ())),
        preferred_element_type=jnp.float32) + b2_ref[...]
    out_ref[...] = jax.nn.sigmoid(logits).reshape(out_ref.shape)


def _pack_params(params, feat_dim):
    """Fold slicing / zero-padding / gate selection into fused, lane-aligned weights."""
    E, F, H = EMBEDDING_DIM, feat_dim, params["hidden_dim"]
    D = 2 * E + F
    assert 2 * H <= GP // 2, "packing assumes hidden_dim <= 32"
    # TODO(synk): for hidden_dim > 32, give each gate its own 128-lane block instead.

    f32 = jnp.float32
    w_ih = params["w_ih"].astype(f32)                    # [4H, E], gate order i,f,g,o
    bias = (params["b_ih"] + params["b_hh"]).astype(f32)
    w_i, w_g, w_o = w_ih[0:H], w_ih[2 * H:3 * H], w_ih[3 * H:4 * H]
    b_i, b_g, b_o = bias[0:H], bias[2 * H:3 * H], bias[3 * H:4 * H]
    w1 = params["w1"].astype(f32)                        # [H, 2H+F]
    b1 = params["b1"].astype(f32)
    w2 = params["w2"].astype(f32)                        # [1, H]
    b2 = params["b2"].astype(f32)                        # [1]

    OO = GP // 2   # o-gate lane offset; roll by 64 is direction-agnostic (period 128)

    WG = jnp.zeros((D, 3 * GP), f32)
    WG = WG.at[0:E, 0:H].set(w_i.T)                               # i_q
    WG = WG.at[E:2 * E, H:2 * H].set(w_i.T)                       # i_p
    WG = WG.at[0:E, OO:OO + H].set(w_o.T)                         # o_q
    WG = WG.at[E:2 * E, OO + H:OO + 2 * H].set(w_o.T)             # o_p
    WG = WG.at[0:E, GP:GP + H].set(w_g.T)                         # g_q
    WG = WG.at[E:2 * E, GP + H:GP + 2 * H].set(w_g.T)             # g_p
    WG = WG.at[2 * E:D, 2 * GP:2 * GP + H].set(w1[:, 2 * H:].T)   # fc1 (feat part)

    BG = jnp.zeros((1, 3 * GP), f32)
    BG = BG.at[0, 0:H].set(b_i)
    BG = BG.at[0, H:2 * H].set(b_i)
    BG = BG.at[0, OO:OO + H].set(b_o)
    BG = BG.at[0, OO + H:OO + 2 * H].set(b_o)
    BG = BG.at[0, GP:GP + H].set(b_g)
    BG = BG.at[0, GP + H:GP + 2 * H].set(b_g)
    BG = BG.at[0, 2 * GP:2 * GP + H].set(b1)

    W1QP = jnp.zeros((GP, GP), f32)
    W1QP = W1QP.at[0:H, 0:H].set(w1[:, 0:H].T)                    # fc1 (h_q part)
    W1QP = W1QP.at[H:2 * H, 0:H].set(w1[:, H:2 * H].T)            # fc1 (h_p part)

    W2P = jnp.zeros((1, GP), f32).at[0, 0:H].set(w2[0])
    B2 = b2.reshape(1, 1)
    return WG, BG, W1QP, W2P, B2


def lstm_similarity_forward(x, params):
    B, D = x.shape
    F = D - 2 * EMBEDDING_DIM
    WG, BG, W1QP, W2P, B2 = _pack_params(params, F)

    # Batch tiling: big tiles to amortize the ~0.35us/step overhead, but keep
    # >= 2 tiles whenever the batch allows so v7x's 2 TensorCores both work.
    TB_TARGET = 1024
    B8 = _round_up(B, 8)
    if B8 >= 2 * TB_TARGET:
        TB = TB_TARGET
    elif B8 >= 256:
        TB = _round_up((B8 + 1) // 2, 128)   # two tiles, lane-dense output stores
    elif B8 >= 16:
        TB = _round_up((B8 + 1) // 2, 8)     # two small tiles
    else:
        TB = B8                              # single tiny tile
    B_pad = _round_up(B, TB)
    num_tiles = B_pad // TB

    # x streams straight into the kernel; only copied when batch padding is needed.
    x_in = x if B_pad == B else jnp.pad(x, ((0, B_pad - B), (0, 0)))

    rep = lambda i: (0, 0)                   # weights: same block for every tile
    out = pl.pallas_call(
        lstm_similarity_kernel,
        out_shape=jax.ShapeDtypeStruct((num_tiles, 1, TB), jnp.float32),
        grid=(num_tiles,),
        in_specs=[
            pl.BlockSpec((TB, D), lambda i: (i, 0)),    # raw input rows
            pl.BlockSpec((D, 3 * GP), rep),             # fused gate / fc1-feat weight
            pl.BlockSpec((1, 3 * GP), rep),             # fused bias
            pl.BlockSpec((GP, GP), rep),                # fc1 (h_q | h_p) weight
            pl.BlockSpec((1, GP), rep),                 # fc2 weight row
            pl.BlockSpec((1, 1), rep),                  # fc2 bias
        ],
        out_specs=pl.BlockSpec((1, 1, TB), lambda i: (i, 0, 0)),
        compiler_params=pltpu.CompilerParams(dimension_semantics=("parallel",)),
    )(x_in, WG, BG, W1QP, W2P, B2)

    # torch .squeeze() -> shape (B,) for B > 1 (for B == 1 torch returns a 0-d scalar).
    return out.reshape(B_pad)[:B]


def init_params(key, hidden_dim, feat_dim):
    """Deterministic synthetic parameters with PyTorch module shapes."""
    H, E, F = hidden_dim, EMBEDDING_DIM, feat_dim
    ks = jax.random.split(key, 8)
    scale = 1.0 / np.sqrt(H)
    u = lambda k, shape: jax.random.uniform(k, shape, jnp.float32, -scale, scale)
    return {
        "hidden_dim": H,
        "w_ih": u(ks[0], (4 * H, E)),      # lstm.weight_ih_l0 (gate order i,f,g,o)
        "w_hh": u(ks[1], (4 * H, H)),      # lstm.weight_hh_l0 (unused: h0 == 0)
        "b_ih": u(ks[2], (4 * H,)),        # lstm.bias_ih_l0
        "b_hh": u(ks[3], (4 * H,)),        # lstm.bias_hh_l0
        "w1":   u(ks[4], (H, 2 * H + F)),  # fc1.weight
        "b1":   u(ks[5], (H,)),            # fc1.bias
        "w2":   u(ks[6], (1, H)),          # fc2.weight
        "b2":   u(ks[7], (1,)),            # fc2.bias
    }


def reference_forward(x, params):
    """Pure-JAX reference reproducing the PyTorch semantics."""
    E, H = EMBEDDING_DIM, params["hidden_dim"]
    q, p, feat = x[:, :E], x[:, E:2 * E], x[:, 2 * E:]
    w_ih = params["w_ih"]
    b = params["b_ih"] + params["b_hh"]

    def lstm_step(v):
        gates = v @ w_ih.T + b
        i = jax.nn.sigmoid(gates[:, 0:H])
        g = jnp.tanh(gates[:, 2 * H:3 * H])
        o = jax.nn.sigmoid(gates[:, 3 * H:4 * H])
        return o * jnp.tanh(i * g)

    z = jnp.concatenate([lstm_step(q), lstm_step(p), feat], axis=1)
    h1 = jnp.maximum(z @ params["w1"].T + params["b1"], 0.0)
    return jax.nn.sigmoid(h1 @ params["w2"].T + params["b2"])[:, 0]


if __name__ == "__main__":
    B, HIDDEN, FEAT = 8, 32, 8
    key = jax.random.PRNGKey(0)
    k_x, k_p = jax.random.split(key)
    x = jax.random.normal(k_x, (B, 2 * EMBEDDING_DIM + FEAT), jnp.float32)
    params = init_params(k_p, HIDDEN, FEAT)

    out = jax.block_until_ready(lstm_similarity_forward(x, params))
    ref = jax.block_until_ready(reference_forward(x, params))

    assert out.shape == (B,)
    np.testing.assert_allclose(np.asarray(out), np.asarray(ref),
                               rtol=1e-5, atol=1e-5)
    print("KERNEL_OK")
</pallas_src>

<mosaic_0001>
module attributes {stable_mosaic.version = 11 : i64} {
  func.func @lstm_similarity_kernel(%arg0: i32, %arg1: memref<8x208xf32, #tpu.memory_space<vmem>>, %arg2: memref<208x384xf32, #tpu.memory_space<vmem>>, %arg3: memref<1x384xf32, #tpu.memory_space<vmem>>, %arg4: memref<128x128xf32, #tpu.memory_space<vmem>>, %arg5: memref<1x128xf32, #tpu.memory_space<vmem>>, %arg6: memref<1x1xf32, #tpu.memory_space<vmem>>, %arg7: memref<1x1x8xf32, #tpu.memory_space<vmem>>) attributes {dimension_semantics = [#tpu.dimension_semantics<parallel>], iteration_bounds = array<i64: 1>, scalar_prefetch = 0 : i64, scratch_operands = 0 : i64, tpu.core_type = #tpu.core_type<tc>, window_params = [{transform_indices = @transform_0, window_bounds = array<i64: 8, 208>}, {pipeline_mode = #tpu.pipeline_mode<synchronous>, transform_indices = @transform_1, window_bounds = array<i64: 208, 384>}, {pipeline_mode = #tpu.pipeline_mode<synchronous>, transform_indices = @transform_2, window_bounds = array<i64: 1, 384>}, {pipeline_mode = #tpu.pipeline_mode<synchronous>, transform_indices = @transform_3, window_bounds = array<i64: 128, 128>}, {pipeline_mode = #tpu.pipeline_mode<synchronous>, transform_indices = @transform_4, window_bounds = array<i64: 1, 128>}, {pipeline_mode = #tpu.pipeline_mode<synchronous>, transform_indices = @transform_5, window_bounds = array<i64: 1, 1>}, {transform_indices = @transform_6, window_bounds = array<i64: 1, 1, 8>}]} {
    %c0 = arith.constant 0 : index
    %c0_0 = arith.constant 0 : index
    %0 = vector.load %arg1[%c0, %c0_0] : memref<8x208xf32, #tpu.memory_space<vmem>>, vector<8x208xf32>
    %c0_1 = arith.constant 0 : index
    %c0_2 = arith.constant 0 : index
    %1 = vector.load %arg2[%c0_1, %c0_2] : memref<208x384xf32, #tpu.memory_space<vmem>>, vector<208x384xf32>
    %cst = arith.constant dense<0.000000e+00> : vector<8x384xf32>
    %2 = tpu.matmul %0, %1, %cst {dimension_numbers = #tpu.dot_dimension_numbers<[1], [0], [0], [1], [0, 0, 1, 1], [], []>} : vector<8x208xf32>, vector<208x384xf32>, vector<8x384xf32> -> vector<8x384xf32>
    %c0_3 = arith.constant 0 : index
    %c0_4 = arith.constant 0 : index
    %3 = vector.load %arg3[%c0_3, %c0_4] : memref<1x384xf32, #tpu.memory_space<vmem>>, vector<1x384xf32>
    %4 = vector.broadcast %3 : vector<1x384xf32> to vector<8x384xf32>
    %5 = arith.addf %2, %4 : vector<8x384xf32>
    %6 = vector.extract_strided_slice %5 {offsets = [0, 0], sizes = [8, 128], strides = [1, 1]} : vector<8x384xf32> to vector<8x128xf32>
    %7 = arith.negf %6 : vector<8x128xf32>
    %8 = math.exp %7 : vector<8x128xf32>
    %cst_5 = arith.constant 1.000000e+00 : f32
    %9 = vector.broadcast %cst_5 : f32 to vector<8x128xf32>
    %10 = arith.addf %9, %8 : vector<8x128xf32>
    %11 = arith.divf %9, %10 : vector<8x128xf32>
    %12 = vector.extract_strided_slice %5 {offsets = [0, 128], sizes = [8, 128], strides = [1, 1]} : vector<8x384xf32> to vector<8x128xf32>
    %13 = math.tanh %12 : vector<8x128xf32>
    %14 = vector.extract_strided_slice %5 {offsets = [0, 256], sizes = [8, 128], strides = [1, 1]} : vector<8x384xf32> to vector<8x128xf32>
    %15 = arith.mulf %11, %13 : vector<8x128xf32>
    %16 = math.tanh %15 : vector<8x128xf32>
    %c64_i32 = arith.constant 64 : i32
    %17 = tpu.dynamic_rotate %11 by %c64_i32 dim 1 : vector<8x128xf32>, i32 -> vector<8x128xf32>
    %18 = arith.mulf %17, %16 : vector<8x128xf32>
    %c0_6 = arith.constant 0 : index
    %c0_7 = arith.constant 0 : index
    %19 = vector.load %arg4[%c0_6, %c0_7] : memref<128x128xf32, #tpu.memory_space<vmem>>, vector<128x128xf32>
    %cst_8 = arith.constant dense<0.000000e+00> : vector<8x128xf32>
    %20 = tpu.matmul %18, %19, %cst_8 {dimension_numbers = #tpu.dot_dimension_numbers<[1], [0], [0], [1], [0, 0, 1, 1], [], []>} : vector<8x128xf32>, vector<128x128xf32>, vector<8x128xf32> -> vector<8x128xf32>
    %21 = arith.addf %20, %14 : vector<8x128xf32>
    %cst_9 = arith.constant 0.000000e+00 : f32
    %22 = vector.broadcast %cst_9 : f32 to vector<8x128xf32>
    %23 = arith.maximumf %21, %22 : vector<8x128xf32>
    %c0_10 = arith.constant 0 : index
    %c0_11 = arith.constant 0 : index
    %24 = vector.load %arg5[%c0_10, %c0_11] : memref<1x128xf32, #tpu.memory_space<vmem>>, vector<1x128xf32>
    %cst_12 = arith.constant dense<0.000000e+00> : vector<1x8xf32>
    %25 = tpu.matmul %24, %23, %cst_12 {dimension_numbers = #tpu.dot_dimension_numbers<[1], [1], [0], [0], [0, 0, 1, 0], [], []>} : vector<1x128xf32>, vector<8x128xf32>, vector<1x8xf32> -> vector<1x8xf32>
    %c0_13 = arith.constant 0 : index
    %c0_14 = arith.constant 0 : index
    %26 = vector.load %arg6[%c0_13, %c0_14] : memref<1x1xf32, #tpu.memory_space<vmem>>, vector<1x1xf32>
    %27 = vector.broadcast %26 : vector<1x1xf32> to vector<1x8xf32>
    %28 = arith.addf %25, %27 : vector<1x8xf32>
    %29 = arith.negf %28 : vector<1x8xf32>
    %30 = math.exp %29 : vector<1x8xf32>
    %cst_15 = arith.constant 1.000000e+00 : f32
    %31 = vector.broadcast %cst_15 : f32 to vector<1x8xf32>
    %32 = arith.addf %31, %30 : vector<1x8xf32>
    %33 = arith.divf %31, %32 : vector<1x8xf32>
    %34 = vector.shape_cast %33 : vector<1x8xf32> to vector<1x1x8xf32>
    %c0_16 = arith.constant 0 : index
    %c0_17 = arith.constant 0 : index
    %c0_18 = arith.constant 0 : index
    %35 = vector.load %arg7[%c0_16, %c0_17, %c0_18] : memref<1x1x8xf32, #tpu.memory_space<vmem>>, vector<1x1x8xf32>
    tpu.vector_store %arg7[%c0_16, %c0_17, %c0_18], %34 {strides = array<i32>} : memref<1x1x8xf32, #tpu.memory_space<vmem>>, vector<1x1x8xf32>,
    return
  }
  func.func @transform_0(%arg0: i32) -> (i32, i32) {
    %c0_i32 = arith.constant 0 : i32
    %c0_i32_0 = arith.constant 0 : i32
    return %arg0, %c0_i32 : i32, i32
  }
  func.func @transform_1(%arg0: i32) -> (i32, i32) {
    %c0_i32 = arith.constant 0 : i32
    %c0_i32_0 = arith.constant 0 : i32
    %c0_i32_1 = arith.constant 0 : i32
    return %c0_i32, %c0_i32_0 : i32, i32
  }
  func.func @transform_2(%arg0: i32) -> (i32, i32) {
    %c0_i32 = arith.constant 0 : i32
    %c0_i32_0 = arith.constant 0 : i32
    %c0_i32_1 = arith.constant 0 : i32
    return %c0_i32, %c0_i32_0 : i32, i32
  }
  func.func @transform_3(%arg0: i32) -> (i32, i32) {
    %c0_i32 = arith.constant 0 : i32
    %c0_i32_0 = arith.constant 0 : i32
    %c0_i32_1 = arith.constant 0 : i32
    return %c0_i32, %c0_i32_0 : i32, i32
  }
  func.func @transform_4(%arg0: i32) -> (i32, i32) {
    %c0_i32 = arith.constant 0 : i32
    %c0_i32_0 = arith.constant 0 : i32
    %c0_i32_1 = arith.constant 0 : i32
    return %c0_i32, %c0_i32_0 : i32, i32
  }
  func.func @transform_5(%arg0: i32) -> (i32, i32) {
    %c0_i32 = arith.constant 0 : i32
    %c0_i32_0 = arith.constant 0 : i32
    %c0_i32_1 = arith.constant 0 : i32
    return %c0_i32, %c0_i32_0 : i32, i32
  }
  func.func @transform_6(%arg0: i32) -> (i32, i32, i32) {
    %c0_i32 = arith.constant 0 : i32
    %c0_i32_0 = arith.constant 0 : i32
    %c0_i32_1 = arith.constant 0 : i32
    return %arg0, %c0_i32, %c0_i32_0 : i32, i32, i32
  }
}

</mosaic_0001>

<llo_original>
// kernel: tpu_custom_call.1
$region0: #{tpu_custom_call.1}
  #allocation0 [shape = 'u32[]', space=smem, size = 0x4, offset = 0x4, fixed_abs, tag = 'smem constant byte address 0x4 - core index']
  #allocation1 [shape = 'u32[144,128]{1,0:T(1,128)}', space=vmem, size = 0x12000, scoped, tag = 'internal scratch']
  #allocation2 [shape = 'f32[1,1]{1,0:T(1,128)S(1)}', space=vmem, size = 0x200, scoped, tag = 'scoped memory for tpu_custom_call.1']
  %s0 = inlined_call_operand.hbm [shape: f32[8,208], index: 0, kind: input, shape index: {}]
  %s1 = inlined_call_operand.hbm [shape: f32[208,384], index: 1, kind: input, shape index: {}]
  %s2 = inlined_call_operand.vmem [shape: f32[1,384], index: 2, kind: input, shape index: {}]
  %s3 = inlined_call_operand.hbm [shape: f32[128,128], index: 3, kind: input, shape index: {}]
  %s4 = inlined_call_operand.vmem [shape: f32[1,128], index: 4, kind: input, shape index: {}]
  %s5 = inlined_call_operand.<no memory space> [shape: f32[1,1], index: 5, kind: input, shape index: {}]
  %s6 = inlined_call_operand.hbm [shape: f32[1,1,8], index: 6, kind: output, shape index: {}]
  %s7 = sld [smem:[#allocation0]]
  $region46: #{tpu_custom_call.1} parent=0
    _
  %s9 = ssub.s32 1, %s7
  %s10 = scalar_select 0, %s9, %s7
  %v11 = vstv %s5
  %12 = vst [vmem:[#allocation2] sm:$0x1] %v11
  $region1: #{tpu_custom_call.1} parent=0
    #allocation3 [shape = 'u8[8192]{0}', space=vmem, size = 0x2000, scoped, tag = 'input window, operand 0, single buffered']
    #allocation4 [shape = 's32[1]{0}', space=sflag, size = 0x4, scoped, tag = 'scoped memory for tpu_custom_call.1']
    #allocation5 [shape = 's32[1]{0}', space=sflag, size = 0x4, scoped, tag = 'scoped memory for tpu_custom_call.1']
    #allocation6 [shape = 'u8[319488]{0}', space=vmem, size = 0x4e000, scoped, tag = 'input window, operand 1, single buffered']
    #allocation7 [shape = 's32[1]{0}', space=sflag, size = 0x4, scoped, tag = 'scoped memory for tpu_custom_call.1']
    #allocation8 [shape = 'u8[65536]{0}', space=vmem, size = 0x10000, scoped, tag = 'input window, operand 3, single buffered']
    #allocation9 [shape = 'u8[512]{0}', space=vmem, size = 0x400, scoped, tag = 'output window, operand 0, single buffered']
    %13 = vsyncpa [#allocation4], 0
    %14 = vsyncpa [#allocation7], 0
    %15 = vsyncpa [#allocation5], 0
    // Predicated region
    $region2: #{tpu_custom_call.1} parent=1 // pred_check
      _
    $region3: #{tpu_custom_call.1} parent=1 // pred_check_branch
      %17 = sbr.rel (0) target = $region5
    $region4: #{tpu_custom_call.1} parent=1 // pred_region
      %s19 = ssub.s32 256, 256
      %20 = vsyncadd [#allocation4], %s19
      %s22 = sshll.u32 [#allocation3], 4
      %s23 = int_to_ptr.vmem [resolvable:$true] %s22
      %25 = dma.hbm_to_vmem [thread:$0]  %s0, 256, %s23, [#allocation4]
    $region5: #{tpu_custom_call.1} parent=1 // pred_fallthru
      _
    // Predicated region
    $region6: #{tpu_custom_call.1} parent=1 // pred_check
      _
    $region7: #{tpu_custom_call.1} parent=1 // pred_check_branch
      %27 = sbr.rel (0) target = $region9
    $region8: #{tpu_custom_call.1} parent=1 // pred_region
      %s29 = ssub.s32 9984, 9984
      %30 = vsyncadd [#allocation7], %s29
      %s31 = sshll.u32 [#allocation6], 4
      %s32 = int_to_ptr.vmem [resolvable:$true] %s31
      %37 = dma.hbm_to_vmem [thread:$0]  %s1, 9984, %s32, [#allocation7], 384, 384, 24
    $region9: #{tpu_custom_call.1} parent=1 // pred_fallthru
      _
    // Predicated region
    $region10: #{tpu_custom_call.1} parent=1 // pred_check
      _
    $region11: #{tpu_custom_call.1} parent=1 // pred_check_branch
      %39 = sbr.rel (0) target = $region13
    $region12: #{tpu_custom_call.1} parent=1 // pred_region
      _
    $region13: #{tpu_custom_call.1} parent=1 // pred_fallthru
      _
    // Predicated region
    $region14: #{tpu_custom_call.1} parent=1 // pred_check
      _
    $region15: #{tpu_custom_call.1} parent=1 // pred_check_branch
      %41 = sbr.rel (0) target = $region17
    $region16: #{tpu_custom_call.1} parent=1 // pred_region
      %s43 = ssub.s32 2048, 2048
      %44 = vsyncadd [#allocation7], %s43
      %s45 = sshll.u32 [#allocation8], 4
      %s46 = int_to_ptr.vmem [resolvable:$true] %s45
      %51 = dma.hbm_to_vmem [thread:$0]  %s3, 2048, %s46, [#allocation7], 128, 128, 8
    $region17: #{tpu_custom_call.1} parent=1 // pred_fallthru
      _
    // Predicated region
    $region18: #{tpu_custom_call.1} parent=1 // pred_check
      _
    $region19: #{tpu_custom_call.1} parent=1 // pred_check_branch
      %53 = sbr.rel (0) target = $region21
    $region20: #{tpu_custom_call.1} parent=1 // pred_region
      _
    $region21: #{tpu_custom_call.1} parent=1 // pred_fallthru
      _
    // Predicated region
    $region22: #{tpu_custom_call.1} parent=1 // pred_check
      _
    $region23: #{tpu_custom_call.1} parent=1 // pred_check_branch
      %55 = sbr.rel (0) target = $region25
    $region24: #{tpu_custom_call.1} parent=1 // pred_region
      _
    $region25: #{tpu_custom_call.1} parent=1 // pred_fallthru
      _
    // Predicated region
    $region26: #{tpu_custom_call.1} parent=1 // pred_check
      _
    $region27: #{tpu_custom_call.1} parent=1 // pred_check_branch
      %57 = sbr.rel (0) target = $region29
    $region28: #{tpu_custom_call.1} parent=1 // pred_region
      %58 = dma.done [#allocation4], 256
    $region29: #{tpu_custom_call.1} parent=1 // pred_fallthru
      _
    // Predicated region
    $region30: #{tpu_custom_call.1} parent=1 // pred_check
      _
    $region31: #{tpu_custom_call.1} parent=1 // pred_check_branch
      %60 = sbr.rel (0) target = $region33
    $region32: #{tpu_custom_call.1} parent=1 // pred_region
      %61 = dma.done [#allocation7], 9984
    $region33: #{tpu_custom_call.1} parent=1 // pred_fallthru
      _
    // Predicated region
    $region34: #{tpu_custom_call.1} parent=1 // pred_check
      _
    $region35: #{tpu_custom_call.1} parent=1 // pred_check_branch
      %63 = sbr.rel (0) target = $region37
    $region36: #{tpu_custom_call.1} parent=1 // pred_region
      %64 = dma.done [#allocation7], 2048
    $region37: #{tpu_custom_call.1} parent=1 // pred_fallthru
      _
    %v65 = vld [vmem:[#allocation3] sm:$0xff]
    %v66 = vld [vmem:[#allocation3 + $0x8] sm:$0xff]
    %v67 = vld [vmem:[#allocation6] sm:$0xff]
    %v68 = vld [vmem:[#allocation6 + $0x8] sm:$0xff]
    %v69 = vld [vmem:[#allocation6 + $0x10] sm:$0xff]
    %v70 = vld [vmem:[#allocation6 + $0x18] sm:$0xff]
    %v71 = vld [vmem:[#allocation6 + $0x20] sm:$0xff]
    %v72 = vld [vmem:[#allocation6 + $0x28] sm:$0xff]
    %v73 = vld [vmem:[#allocation6 + $0x30] sm:$0xff]
    %v74 = vld [vmem:[#allocation6 + $0x38] sm:$0xff]
    %v75 = vld [vmem:[#allocation6 + $0x40] sm:$0xff]
    %v76 = vld [vmem:[#allocation6 + $0x48] sm:$0xff]
    %v77 = vld [vmem:[#allocation6 + $0x50] sm:$0xff]
    %v78 = vld [vmem:[#allocation6 + $0x58] sm:$0xff]
    %v79 = vld [vmem:[#allocation6 + $0x60] sm:$0xff]
    %v80 = vld [vmem:[#allocation6 + $0x68] sm:$0xff]
    %v81 = vld [vmem:[#allocation6 + $0x70] sm:$0xff]
    %v82 = vld [vmem:[#allocation6 + $0x78] sm:$0xff]
    %v83 = vld [vmem:[#allocation6 + $0x80] sm:$0xff]
    %v84 = vld [vmem:[#allocation6 + $0x88] sm:$0xff]
    %v85 = vld [vmem:[#allocation6 + $0x90] sm:$0xff]
    %v86 = vld [vmem:[#allocation6 + $0x98] sm:$0xff]
    %v87 = vld [vmem:[#allocation6 + $0xa0] sm:$0xff]
    %v88 = vld [vmem:[#allocation6 + $0xa8] sm:$0xff]
    %v89 = vld [vmem:[#allocation6 + $0xb0] sm:$0xff]
    %v90 = vld [vmem:[#allocation6 + $0xb8] sm:$0xff]
    %v91 = vld [vmem:[#allocation6 + $0xc0] sm:$0xff]
    %v92 = vld [vmem:[#allocation6 + $0xc8] sm:$0xff]
    %v93 = vld [vmem:[#allocation6 + $0xd0] sm:$0xff]
    %v94 = vld [vmem:[#allocation6 + $0xd8] sm:$0xff]
    %v95 = vld [vmem:[#allocation6 + $0xe0] sm:$0xff]
    %v96 = vld [vmem:[#allocation6 + $0xe8] sm:$0xff]
    %v97 = vld [vmem:[#allocation6 + $0xf0] sm:$0xff]
    %v98 = vld [vmem:[#allocation6 + $0xf8] sm:$0xff]
    %v99 = vld [vmem:[#allocation6 + $0x100] sm:$0xff]
    %v100 = vld [vmem:[#allocation6 + $0x108] sm:$0xff]
    %v101 = vld [vmem:[#allocation6 + $0x110] sm:$0xff]
    %v102 = vld [vmem:[#allocation6 + $0x118] sm:$0xff]
    %v103 = vld [vmem:[#allocation6 + $0x120] sm:$0xff]
    %v104 = vld [vmem:[#allocation6 + $0x128] sm:$0xff]
    %v105 = vld [vmem:[#allocation6 + $0x130] sm:$0xff]
    %v106 = vld [vmem:[#allocation6 + $0x138] sm:$0xff]
    %v107 = vld [vmem:[#allocation6 + $0x140] sm:$0xff]
    %v108 = vld [vmem:[#allocation6 + $0x148] sm:$0xff]
    %v109 = vld [vmem:[#allocation6 + $0x150] sm:$0xff]
    %v110 = vld [vmem:[#allocation6 + $0x158] sm:$0xff]
    %v111 = vld [vmem:[#allocation6 + $0x160] sm:$0xff]
    %v112 = vld [vmem:[#allocation6 + $0x168] sm:$0xff]
    %v113 = vld [vmem:[#allocation6 + $0x170] sm:$0xff]
    %v114 = vld [vmem:[#allocation6 + $0x178] sm:$0xff]
    %v115 = vld [vmem:[#allocation6 + $0x180] sm:$0xff]
    %v116 = vld [vmem:[#allocation6 + $0x188] sm:$0xff]
    %v117 = vld [vmem:[#allocation6 + $0x190] sm:$0xff]
    %v118 = vld [vmem:[#allocation6 + $0x198] sm:$0xff]
    %v119 = vld [vmem:[#allocation6 + $0x1a0] sm:$0xff]
    %v120 = vld [vmem:[#allocation6 + $0x1a8] sm:$0xff]
    %v121 = vld [vmem:[#allocation6 + $0x1b0] sm:$0xff]
    %v122 = vld [vmem:[#allocation6 + $0x1b8] sm:$0xff]
    %v123 = vld [vmem:[#allocation6 + $0x1c0] sm:$0xff]
    %v124 = vld [vmem:[#allocation6 + $0x1c8] sm:$0xff]
    %v125 = vld [vmem:[#allocation6 + $0x1d0] sm:$0xff]
    %v126 = vld [vmem:[#allocation6 + $0x1d8] sm:$0xff]
    %v127 = vld [vmem:[#allocation6 + $0x1e0] sm:$0xff]
    %v128 = vld [vmem:[#allocation6 + $0x1e8] sm:$0xff]
    %v129 = vld [vmem:[#allocation6 + $0x1f0] sm:$0xff]
    %v130 = vld [vmem:[#allocation6 + $0x1f8] sm:$0xff]
    %v131 = vld [vmem:[#allocation6 + $0x200] sm:$0xff]
    %v132 = vld [vmem:[#allocation6 + $0x208] sm:$0xff]
    %v133 = vld [vmem:[#allocation6 + $0x210] sm:$0xff]
    %v134 = vld [vmem:[#allocation6 + $0x218] sm:$0xff]
    %v135 = vld [vmem:[#allocation6 + $0x220] sm:$0xff]
    %v136 = vld [vmem:[#allocation6 + $0x228] sm:$0xff]
    %v137 = vld [vmem:[#allocation6 + $0x230] sm:$0xff]
    %v138 = vld [vmem:[#allocation6 + $0x238] sm:$0xff]
    %v139 = vld [vmem:[#allocation6 + $0x240] sm:$0xff]
    %v140 = vld [vmem:[#allocation6 + $0x248] sm:$0xff]
    %v141 = vld [vmem:[#allocation6 + $0x250] sm:$0xff]
    %v142 = vld [vmem:[#allocation6 + $0x258] sm:$0xff]
    %v143 = vld [vmem:[#allocation6 + $0x260] sm:$0xff]
    %v144 = vld [vmem:[#allocation6 + $0x268] sm:$0xff]
    %v145 = vld [vmem:[%s2] sm:$0x7]
    %v147 = vlaneseq
    %v148 = vshrl.u32 %v147, 7
    %v149 = vsub.s32 0, %v148
    %v150 = vrot.slane %v145, %v149
    %v151 = vlaneseq
    %v152 = vshrl.u32 %v151, 7
    %v153 = vsub.s32 1, %v152
    %v154 = vrot.slane %v145, %v153
    %v155 = vlaneseq
    %v156 = vshrl.u32 %v155, 7
    %v157 = vsub.s32 2, %v156
    %v158 = vrot.slane %v145, %v157
    %vm162 = vcmask 654336
    %v164 = vsel %vm162, %v66, 0
    %166 = vmatprep.subr.mxu0 %v68
    %167 = vmatpush1.msra.mxu0 %v67
    %168 = vmatprep.subr.mxu0 %v71
    %169 = vmatpush1.msra.mxu0 %v70
    %170 = vmatprep.subr.mxu0 %v74
    %171 = vmatpush1.msra.mxu0 %v73
    %172 = vmatprep.subr.mxu0 %v77
    %173 = vmatpush1.msra.mxu0 %v76
    %174 = vmatprep.subr.mxu0 %v80
    %175 = vmatpush1.msra.mxu0 %v79
    %176 = vmatprep.subr.mxu0 %v83
    %177 = vmatpush1.msra.mxu0 %v82
    %178 = vmatprep.subr.mxu0 %v86
    %179 = vmatpush1.msra.mxu0 %v85
    %180 = vmatprep.subr.mxu0 %v89
    %181 = vmatpush1.msra.mxu0 %v88
    %182 = vmatprep.subr.mxu0 %v92
    %183 = vmatpush1.msra.mxu0 %v91
    %184 = vmatprep.subr.mxu0 %v95
    %185 = vmatpush1.msra.mxu0 %v94
    %186 = vmatprep.subr.mxu0 %v98
    %187 = vmatpush1.msra.mxu0 %v97
    %188 = vmatprep.subr.mxu0 %v101
    %189 = vmatpush1.msra.mxu0 %v100
    %190 = vmatprep.subr.mxu0 %v104
    %191 = vmatpush1.msra.mxu0 %v103
    %192 = vmatprep.subr.mxu0 %v107
    %193 = vmatpush1.msra.mxu0 %v106
    %194 = vmatprep.subr.mxu0 %v110
    %195 = vmatpush1.msra.mxu0 %v109
    %196 = vmatprep.subr.mxu0 %v113
    %197 = vmatpush1.msra.mxu0 %v112
    %198 = vmatprep.subr.mxu0 %v116
    %199 = vmatpush1.msra.mxu0 %v115
    %200 = vmatprep.subr.mxu0 %v119
    %201 = vmatpush1.msra.mxu0 %v118
    %202 = vmatprep.subr.mxu0 %v122
    %203 = vmatpush1.msra.mxu0 %v121
    %204 = vmatprep.subr.mxu0 %v125
    %205 = vmatpush1.msra.mxu0 %v124
    %206 = vmatprep.subr.mxu0 %v128
    %207 = vmatpush1.msra.mxu0 %v127
    %208 = vmatprep.subr.mxu0 %v131
    %209 = vmatpush1.msra.mxu0 %v130
    %210 = vmatprep.subr.mxu0 %v134
    %211 = vmatpush1.msra.mxu0 %v133
    %212 = vmatprep.subr.mxu0 %v137
    %213 = vmatpush1.msra.mxu0 %v136
    %214 = vmatprep.subr.mxu0 %v140
    %215 = vmatpush1.msra.mxu0 %v139
    %216 = vmatprep.subr.mxu0 %v143
    %217 = vmatpush1.msra.mxu0 %v142
    %218 = vmatprep.subr.mxu0 0.0
    %219 = vmatpush1.msra.mxu0 0.0
    %220 = vmatprep.subr.mxu0 0.0
    %221 = vmatpush1.msra.mxu0 0.0
    %222 = vmatprep.subr.mxu0 0.0
    %223 = vmatpush1.msra.mxu0 0.0
    %224 = vmatprep.subr.mxu0 0.0
    %225 = vmatpush1.msra.mxu0 0.0
    %226 = vmatprep.subr.mxu0 0.0
    %227 = vmatpush1.msra.mxu0 0.0
    %228 = vmatprep.subr.mxu0 0.0
    %229 = vmatpush1.msra.mxu0 0.0
    %230 = vmatprep.mubr.f32.mxu0 %v164
    %231 = vmatmul.mubr.f32.gmra.mrb[0].mxu0 %v65
    %v232 = vpop.f32.mrb[0].mxu0
    %v233 = vadd.f32 %v150, %v232
    %v234 = vpop.f32.mrb[0].mxu0
    %v235 = vadd.f32 %v154, %v234
    %236 = vdwg.mxu0
    %237 = vmatprep.subr.mxu0 0.0
    %238 = vmatpush1.msra.mxu0 %v69
    %239 = vmatprep.subr.mxu0 0.0
    %240 = vmatpush1.msra.mxu0 %v72
    %241 = vmatprep.subr.mxu0 0.0
    %242 = vmatpush1.msra.mxu0 %v75
    %243 = vmatprep.subr.mxu0 0.0
    %244 = vmatpush1.msra.mxu0 %v78
    %245 = vmatprep.subr.mxu0 0.0
    %246 = vmatpush1.msra.mxu0 %v81
    %247 = vmatprep.subr.mxu0 0.0
    %248 = vmatpush1.msra.mxu0 %v84
    %249 = vmatprep.subr.mxu0 0.0
    %250 = vmatpush1.msra.mxu0 %v87
    %251 = vmatprep.subr.mxu0 0.0
    %252 = vmatpush1.msra.mxu0 %v90
    %253 = vmatprep.subr.mxu0 0.0
    %254 = vmatpush1.msra.mxu0 %v93
    %255 = vmatprep.subr.mxu0 0.0
    %256 = vmatpush1.msra.mxu0 %v96
    %257 = vmatprep.subr.mxu0 0.0
    %258 = vmatpush1.msra.mxu0 %v99
    %259 = vmatprep.subr.mxu0 0.0
    %260 = vmatpush1.msra.mxu0 %v102
    %261 = vmatprep.subr.mxu0 0.0
    %262 = vmatpush1.msra.mxu0 %v105
    %263 = vmatprep.subr.mxu0 0.0
    %264 = vmatpush1.msra.mxu0 %v108
    %265 = vmatprep.subr.mxu0 0.0
    %266 = vmatpush1.msra.mxu0 %v111
    %267 = vmatprep.subr.mxu0 0.0
    %268 = vmatpush1.msra.mxu0 %v114
    %269 = vmatprep.subr.mxu0 0.0
    %270 = vmatpush1.msra.mxu0 %v117
    %271 = vmatprep.subr.mxu0 0.0
    %272 = vmatpush1.msra.mxu0 %v120
    %273 = vmatprep.subr.mxu0 0.0
    %274 = vmatpush1.msra.mxu0 %v123
    %275 = vmatprep.subr.mxu0 0.0
    %276 = vmatpush1.msra.mxu0 %v126
    %277 = vmatprep.subr.mxu0 0.0
    %278 = vmatpush1.msra.mxu0 %v129
    %279 = vmatprep.subr.mxu0 0.0
    %280 = vmatpush1.msra.mxu0 %v132
    %281 = vmatprep.subr.mxu0 0.0
    %282 = vmatpush1.msra.mxu0 %v135
    %283 = vmatprep.subr.mxu0 0.0
    %284 = vmatpush1.msra.mxu0 %v138
    %285 = vmatprep.subr.mxu0 0.0
    %286 = vmatpush1.msra.mxu0 %v141
    %287 = vmatprep.subr.mxu0 0.0
    %288 = vmatpush1.msra.mxu0 %v144
    %289 = vmatprep.subr.mxu0 0.0
    %290 = vmatpush1.msra.mxu0 0.0
    %291 = vmatprep.subr.mxu0 0.0
    %292 = vmatpush1.msra.mxu0 0.0
    %293 = vmatprep.subr.mxu0 0.0
    %294 = vmatpush1.msra.mxu0 0.0
    %295 = vmatprep.subr.mxu0 0.0
    %296 = vmatpush1.msra.mxu0 0.0
    %297 = vmatprep.subr.mxu0 0.0
    %298 = vmatpush1.msra.mxu0 0.0
    %299 = vmatprep.subr.mxu0 0.0
    %300 = vmatpush1.msra.mxu0 0.0
    %301 = vmatprep.mubr.f32.mxu0 %v164
    %302 = vmatmul.mubr.f32.gmra.mrb[0].mxu0 %v65
    %v303 = vpop.f32.mrb[0].mxu0
    %v304 = vadd.f32 %v158, %v303
    %v305 = vpop.f32.mrb[0].mxu0
    %306 = vdwg.mxu0
    %v307 = vxor.u32 %v233, 2147483648
    %v308 = vmul.f32 %v307, 1.442695
    %v309 = vpow.pop %v308
    %v310 = vadd.f32 %v309, 1.0
    %v311 = vrcp.pop %v310
    %v312 = vmul.f32 1.0, %v311
    %v313 = vtanh.pop %v235
    %v314 = vmul.f32 %v312, %v313
    %v315 = vtanh.pop %v314
    %316 = vrot.lane.b32.xlu0 %v312, 64
    %v317 = vpop.permute.xlu0 %316
    %v318 = vmul.f32 %v317, %v315
    %v319 = vld [vmem:[#allocation8] sm:$0xff]
    %v320 = vld [vmem:[#allocation8 + $0x8] sm:$0xff]
    %v321 = vld [vmem:[#allocation8 + $0x10] sm:$0xff]
    %v322 = vld [vmem:[#allocation8 + $0x18] sm:$0xff]
    %v323 = vld [vmem:[#allocation8 + $0x20] sm:$0xff]
    %v324 = vld [vmem:[#allocation8 + $0x28] sm:$0xff]
    %v325 = vld [vmem:[#allocation8 + $0x30] sm:$0xff]
    %v326 = vld [vmem:[#allocation8 + $0x38] sm:$0xff]
    %v327 = vld [vmem:[#allocation8 + $0x40] sm:$0xff]
    %v328 = vld [vmem:[#allocation8 + $0x48] sm:$0xff]
    %v329 = vld [vmem:[#allocation8 + $0x50] sm:$0xff]
    %v330 = vld [vmem:[#allocation8 + $0x58] sm:$0xff]
    %v331 = vld [vmem:[#allocation8 + $0x60] sm:$0xff]
    %v332 = vld [vmem:[#allocation8 + $0x68] sm:$0xff]
    %v333 = vld [vmem:[#allocation8 + $0x70] sm:$0xff]
    %v334 = vld [vmem:[#allocation8 + $0x78] sm:$0xff]
    %335 = vmatprep.subr.mxu0 0.0
    %336 = vmatpush1.msra.mxu0 %v319
    %337 = vmatprep.subr.mxu0 0.0
    %338 = vmatpush1.msra.mxu0 %v320
    %339 = vmatprep.subr.mxu0 0.0
    %340 = vmatpush1.msra.mxu0 %v321
    %341 = vmatprep.subr.mxu0 0.0
    %342 = vmatpush1.msra.mxu0 %v322
    %343 = vmatprep.subr.mxu0 0.0
    %344 = vmatpush1.msra.mxu0 %v323
    %345 = vmatprep.subr.mxu0 0.0
    %346 = vmatpush1.msra.mxu0 %v324
    %347 = vmatprep.subr.mxu0 0.0
    %348 = vmatpush1.msra.mxu0 %v325
    %349 = vmatprep.subr.mxu0 0.0
    %350 = vmatpush1.msra.mxu0 %v326
    %351 = vmatprep.subr.mxu0 0.0
    %352 = vmatpush1.msra.mxu0 %v327
    %353 = vmatprep.subr.mxu0 0.0
    %354 = vmatpush1.msra.mxu0 %v328
    %355 = vmatprep.subr.mxu0 0.0
    %356 = vmatpush1.msra.mxu0 %v329
    %357 = vmatprep.subr.mxu0 0.0
    %358 = vmatpush1.msra.mxu0 %v330
    %359 = vmatprep.subr.mxu0 0.0
    %360 = vmatpush1.msra.mxu0 %v331
    %361 = vmatprep.subr.mxu0 0.0
    %362 = vmatpush1.msra.mxu0 %v332
    %363 = vmatprep.subr.mxu0 0.0
    %364 = vmatpush1.msra.mxu0 %v333
    %365 = vmatprep.subr.mxu0 0.0
    %366 = vmatpush1.msra.mxu0 %v334
    %367 = vmatprep.subr.mxu0 0.0
    %368 = vmatpush1.msra.mxu0 0.0
    %369 = vmatprep.subr.mxu0 0.0
    %370 = vmatpush1.msra.mxu0 0.0
    %371 = vmatprep.subr.mxu0 0.0
    %372 = vmatpush1.msra.mxu0 0.0
    %373 = vmatprep.subr.mxu0 0.0
    %374 = vmatpush1.msra.mxu0 0.0
    %375 = vmatprep.subr.mxu0 0.0
    %376 = vmatpush1.msra.mxu0 0.0
    %377 = vmatprep.subr.mxu0 0.0
    %378 = vmatpush1.msra.mxu0 0.0
    %379 = vmatprep.subr.mxu0 0.0
    %380 = vmatpush1.msra.mxu0 0.0
    %381 = vmatprep.subr.mxu0 0.0
    %382 = vmatpush1.msra.mxu0 0.0
    %383 = vmatprep.subr.mxu0 0.0
    %384 = vmatpush1.msra.mxu0 0.0
    %385 = vmatprep.subr.mxu0 0.0
    %386 = vmatpush1.msra.mxu0 0.0
    %387 = vmatprep.subr.mxu0 0.0
    %388 = vmatpush1.msra.mxu0 0.0
    %389 = vmatprep.subr.mxu0 0.0
    %390 = vmatpush1.msra.mxu0 0.0
    %391 = vmatprep.subr.mxu0 0.0
    %392 = vmatpush1.msra.mxu0 0.0
    %393 = vmatprep.subr.mxu0 0.0
    %394 = vmatpush1.msra.mxu0 0.0
    %395 = vmatprep.subr.mxu0 0.0
    %396 = vmatpush1.msra.mxu0 0.0
    %397 = vmatprep.subr.mxu0 0.0
    %398 = vmatpush1.msra.mxu0 0.0
    %399 = vmatprep.mubr.f32.mxu0 0.0
    %400 = vmatmul.mubr.f32.gmra.mrb[0].mxu0 %v318
    %v401 = vpop.f32.mrb[0].mxu0
    %v402 = vadd.f32 %v304, %v401
    %v403 = vpop.f32.mrb[0].mxu0
    %404 = vdwg.mxu0
    %v405 = vmax.f32 %v402, 0.0
    %v406 = vld [vmem:[%s4] sm:$0x1]
    %v407 = vld [vmem:[#allocation2] sm:$0x1]
    %409 = vset.pattern.permute.xlu0 0
    %410 = vperm.xlu0 %409, %v407
    %v411 = vpop.permute.xlu0 %410
    %v413 = vlaneseq
    %v414 = vshrl.u32 %v413, 7
    %v415 = vsub.s32 0, %v414
    %v416 = vrot.slane %v411, %v415
    %417 = vmatprep.subr.mxu0 0.0
    %418 = vmatpush1.xpose.msra.mxu0 %v405
    %419 = vmatprep.subr.mxu0 0.0
    %420 = vmatpush1.xpose.msra.mxu0 0.0
    %421 = vmatprep.subr.mxu0 0.0
    %422 = vmatpush1.xpose.msra.mxu0 0.0
    %423 = vmatprep.subr.mxu0 0.0
    %424 = vmatpush1.xpose.msra.mxu0 0.0
    %425 = vmatprep.subr.mxu0 0.0
    %426 = vmatpush1.xpose.msra.mxu0 0.0
    %427 = vmatprep.subr.mxu0 0.0
    %428 = vmatpush1.xpose.msra.mxu0 0.0
    %429 = vmatprep.subr.mxu0 0.0
    %430 = vmatpush1.xpose.msra.mxu0 0.0
    %431 = vmatprep.subr.mxu0 0.0
    %432 = vmatpush1.xpose.msra.mxu0 0.0
    %433 = vmatprep.subr.mxu0 0.0
    %434 = vmatpush1.xpose.msra.mxu0 0.0
    %435 = vmatprep.subr.mxu0 0.0
    %436 = vmatpush1.xpose.msra.mxu0 0.0
    %437 = vmatprep.subr.mxu0 0.0
    %438 = vmatpush1.xpose.msra.mxu0 0.0
    %439 = vmatprep.subr.mxu0 0.0
    %440 = vmatpush1.xpose.msra.mxu0 0.0
    %441 = vmatprep.subr.mxu0 0.0
    %442 = vmatpush1.xpose.msra.mxu0 0.0
    %443 = vmatprep.subr.mxu0 0.0
    %444 = vmatpush1.xpose.msra.mxu0 0.0
    %445 = vmatprep.subr.mxu0 0.0
    %446 = vmatpush1.xpose.msra.mxu0 0.0
    %447 = vmatprep.subr.mxu0 0.0
    %448 = vmatpush1.xpose.msra.mxu0 0.0
    %449 = vmatprep.subr.mxu0 0.0
    %450 = vmatpush1.xpose.msra.mxu0 0.0
    %451 = vmatprep.subr.mxu0 0.0
    %452 = vmatpush1.xpose.msra.mxu0 0.0
    %453 = vmatprep.subr.mxu0 0.0
    %454 = vmatpush1.xpose.msra.mxu0 0.0
    %455 = vmatprep.subr.mxu0 0.0
    %456 = vmatpush1.xpose.msra.mxu0 0.0
    %457 = vmatprep.subr.mxu0 0.0
    %458 = vmatpush1.xpose.msra.mxu0 0.0
    %459 = vmatprep.subr.mxu0 0.0
    %460 = vmatpush1.xpose.msra.mxu0 0.0
    %461 = vmatprep.subr.mxu0 0.0
    %462 = vmatpush1.xpose.msra.mxu0 0.0
    %463 = vmatprep.subr.mxu0 0.0
    %464 = vmatpush1.xpose.msra.mxu0 0.0
    %465 = vmatprep.subr.mxu0 0.0
    %466 = vmatpush1.xpose.msra.mxu0 0.0
    %467 = vmatprep.subr.mxu0 0.0
    %468 = vmatpush1.xpose.msra.mxu0 0.0
    %469 = vmatprep.subr.mxu0 0.0
    %470 = vmatpush1.xpose.msra.mxu0 0.0
    %471 = vmatprep.subr.mxu0 0.0
    %472 = vmatpush1.xpose.msra.mxu0 0.0
    %473 = vmatprep.subr.mxu0 0.0
    %474 = vmatpush1.xpose.msra.mxu0 0.0
    %475 = vmatprep.subr.mxu0 0.0
    %476 = vmatpush1.xpose.msra.mxu0 0.0
    %477 = vmatprep.subr.mxu0 0.0
    %478 = vmatpush1.xpose.msra.mxu0 0.0
    %479 = vmatprep.subr.mxu0 0.0
    %480 = vmatpush1.xpose.msra.mxu0 0.0
    %481 = vmatprep.mubr.f32.mxu0 0.0
    %482 = vmatmul.mubr.f32.gmra.mrb[0].mxu0 %v406
    %v483 = vpop.f32.mrb[0].mxu0
    %v484 = vadd.f32 %v416, %v483
    %v485 = vpop.f32.mrb[0].mxu0
    %486 = vdwg.mxu0
    %v487 = vxor.u32 %v484, 2147483648
    %v488 = vmul.f32 %v487, 1.442695
    %v489 = vpow.pop %v488
    %v490 = vadd.f32 %v489, 1.0
    %v491 = vrcp.pop %v490
    %v492 = vmul.f32 1.0, %v491
    %vm493 = vcmask 57344
    %494 = vst.msk [vmem:[#allocation9] sm:$0x1] %vm493, %v492
    // Predicated region
    $region38: #{tpu_custom_call.1} parent=1 // pred_check
      _
    $region39: #{tpu_custom_call.1} parent=1 // pred_check_branch
      %496 = sbr.rel (0) target = $region41
    $region40: #{tpu_custom_call.1} parent=1 // pred_region
      %s498 = ssub.s32 16, 16
      %499 = vsyncadd [#allocation5], %s498
      %s501 = sshll.u32 [#allocation9], 4
      %s502 = int_to_ptr.vmem [resolvable:$true] %s501
      %504 = dma.vmem_to_hbm [thread:$0]  %s502, 16, %s6, [#allocation5]
    $region41: #{tpu_custom_call.1} parent=1 // pred_fallthru
      _
    // Predicated region
    $region42: #{tpu_custom_call.1} parent=1 // pred_check
      _
    $region43: #{tpu_custom_call.1} parent=1 // pred_check_branch
      %506 = sbr.rel (0) target = $region45
    $region44: #{tpu_custom_call.1} parent=1 // pred_region
      %507 = dma.done [#allocation5], 16
    $region45: #{tpu_custom_call.1} parent=1 // pred_fallthru
      _
    %508 = vsyncpa [#allocation4], 1
    %509 = vsyncpa [#allocation7], 1
    %510 = vsyncpa [#allocation5], 1

</llo_original>
